<compile_context>
chip_gen: v7x
topology: tpu7x:2x2x1
jax: 0.10.0
libtpu: 0.0.40
codegen_flags: <defaults>
</compile_context>

<pallas_src>
import functools

import jax
import jax.numpy as jnp
from jax.experimental import pallas as pl
from jax.experimental.pallas import tpu as pltpu

_INV_SQRT2 = 0.7071067811865476


def _ffn_kernel(x_ref, w1_ref, b1_ref, w2_ref, b2_ref, *rest,
                has_mask, use_scratch, single_f_step):
    # Trailing refs: [valid?], out, [acc scratch?]
    if use_scratch:
        if has_mask:
            valid_ref, o_ref, acc_ref = rest
        else:
            o_ref, acc_ref = rest
    else:
        if has_mask:
            valid_ref, o_ref = rest
        else:
            (o_ref,) = rest
        acc_ref = o_ref        # f32 output block doubles as the accumulator

    # ---- w_1 over this d_ff slice: (tile_n, D) @ (D, tile_f), f32 accumulate ----
    h = jnp.dot(x_ref[...], w1_ref[...], preferred_element_type=jnp.float32)
    h = h + b1_ref[...].astype(jnp.float32)

    # ---- exact (erf) GELU in f32, matching torch.nn.GELU() default ----
    # (tanh-approx would move this onto the EUP slot; kept exact for parity.)
    h = 0.5 * h * (1.0 + jax.lax.erf(h * jnp.float32(_INV_SQRT2)))

    # TODO(synk): nn.Dropout is identity here (inference); training-mode dropout
    # would need an in-kernel PRNG path (pltpu.prng_seed / stateful_bernoulli).

    # ---- partial w_2: (tile_n, tile_f) @ (tile_f, D), f32 accumulate ----
    partial = jnp.dot(h.astype(w2_ref.dtype), w2_ref[...],
                      preferred_element_type=jnp.float32)

    def epilogue(acc):
        y = acc + b2_ref[...].astype(jnp.float32)
        if has_mask:
            # rows with mask.sum(-1) == 0 are zeroed (x[~mask] = 0)
            y = jnp.where(valid_ref[...] > 0.0, y, 0.0)
        o_ref[...] = y.astype(o_ref.dtype)

    if single_f_step:
        epilogue(partial)
        return

    f = pl.program_id(1)

    @pl.when(f == 0)
    def _():
        acc_ref[...] = partial          # first partial: no zero-fill + read-add

    @pl.when(f > 0)
    def _():
        acc_ref[...] += partial

    @pl.when(f == pl.num_programs(1) - 1)
    def _():
        epilogue(acc_ref[...])


def _round_up(a, m):
    return ((a + m - 1) // m) * m


def _vmem_capacity_bytes():
    try:
        return int(pltpu.get_tpu_info().vmem_capacity_bytes)
    except Exception:
        return 64 << 20          # conservative: v7x per-TensorCore VMEM


def _working_set_bytes(tile_n, tile_f, D, x_bytes, w_bytes, out_bytes,
                       has_mask, needs_f32_acc):
    nbuf = 2                     # BlockSpec double-buffering
    ws = nbuf * tile_n * D * x_bytes          # x tile
    ws += nbuf * tile_n * D * out_bytes       # out tile
    ws += nbuf * D * tile_f * w_bytes         # W1 slice
    ws += nbuf * tile_f * w_bytes             # b1 slice
    ws += nbuf * tile_f * D * w_bytes         # W2 slice
    ws += nbuf * D * w_bytes                  # b2
    if has_mask:
        ws += nbuf * tile_n * 4               # per-row validity flag (f32)
    if needs_f32_acc:
        ws += tile_n * D * 4                  # f32 accumulator scratch
    return int(ws)


def _tile_f_candidates(d_ff):
    """Descending tile_f candidates: full residency, then 256- then 128-multiples."""
    cands = [d_ff]
    for step in (256, 128):
        for m in range(((d_ff - 1) // step) * step, 0, -step):
            if d_ff % m == 0 and m not in cands:
                cands.append(m)
    return cands


def _select_tiles(N, D, d_ff, x_bytes, w_bytes, out_bytes, has_mask,
                  needs_f32_acc, budget):
    n_cap = _round_up(max(N, 1), 8)
    min_tn = min(256, n_cap)

    def tn_candidates(pref):
        cands = [t for t in (2048, 1024, 512, 256, 128, 64, 32, 16, 8)
                 if t <= min(pref, n_cap)]
        if n_cap <= pref and n_cap not in cands:
            cands.insert(0, n_cap)
        return cands or [8]

    def fits(tn, tf):
        return _working_set_bytes(tn, tf, D, x_bytes, w_bytes, out_bytes,
                                  has_mask, needs_f32_acc) <= budget

    tf_cands = _tile_f_candidates(d_ff)
    stream_cands = [c for c in tf_cands if c < d_ff]

    # Pass 1: fully VMEM-resident weights (no per-row-tile HBM restream) with a
    # decent row tile.
    for tile_n in tn_candidates(512):
        if tile_n < min_tn:
            break
        if fits(tile_n, d_ff):
            return tile_n, d_ff

    # Pass 2: stream d_ff.  Weight HBM traffic scales with n_pad/tile_n, so
    # maximise tile_n first; within it pick the largest tile_f (>=256 keeps the
    # MXU K-dim full and limits f32-accumulator RMW passes).
    for min_tf in (256, 128, 1):
        for tile_n in tn_candidates(1024):
            for tile_f in (c for c in stream_cands if c >= min_tf):
                if fits(tile_n, tile_f):
                    return tile_n, tile_f

    # Pass 3: nothing fits the budget cleanly; smallest configuration, and let
    # vmem_limit_bytes absorb the overshoot.
    return 8, (stream_cands[-1] if stream_cands else d_ff)


def positionwise_feed_forward(x, w1, b1, w2, b2, mask=None):
    """x: (B, S, d_model); w1: (d_model, d_ff); w2: (d_ff, d_model); mask: (B, S, M)."""
    B, S, D = x.shape
    d_ff = w1.shape[1]
    N = B * S
    out_dtype = x.dtype
    has_mask = mask is not None

    x_bytes = jnp.dtype(x.dtype).itemsize
    w_bytes = jnp.dtype(w1.dtype).itemsize
    out_bytes = jnp.dtype(out_dtype).itemsize
    needs_f32_acc = out_dtype != jnp.float32      # conservative for tile budgeting

    # ---- generation-aware, VMEM-budget-driven tile selection ----
    vmem_cap = _vmem_capacity_bytes()
    budget = int(0.70 * vmem_cap)                 # headroom for compiler internals
    tile_n, tile_f = _select_tiles(N, D, d_ff, x_bytes, w_bytes, out_bytes,
                                   has_mask, needs_f32_acc, budget)

    # v7x megacore: ensure the "parallel" row axis has >= 2 steps when weights
    # are resident (no restream penalty); an extra grid step is ~free elsewhere.
    if (tile_f == d_ff and _round_up(N, tile_n) // tile_n < 2
            and tile_n >= 16 and tile_n % 16 == 0):
        tile_n //= 2

    n_pad = _round_up(N, tile_n)
    n_f = d_ff // tile_f
    single_f_step = n_f == 1
    use_scratch = (not single_f_step) and (out_dtype != jnp.float32)

    # Explicit VMEM budget sized from the real working set.
    ws = _working_set_bytes(tile_n, tile_f, D, x_bytes, w_bytes, out_bytes,
                            has_mask, use_scratch)
    vmem_limit = max(2 * ws, 32 << 20)
    vmem_limit = min(vmem_limit, int(0.9 * vmem_cap))
    vmem_limit = min(max(vmem_limit, ws), vmem_cap)

    xf = x.reshape(N, D)
    if n_pad != N:
        xf = jnp.pad(xf, ((0, n_pad - N), (0, 0)))

    b1r = b1.reshape(1, d_ff)
    b2r = b2.reshape(1, D)

    inputs = [xf, w1, b1r, w2, b2r]
    in_specs = [
        pl.BlockSpec((tile_n, D), lambda i, f: (i, 0)),   # x tile (resident over f)
        pl.BlockSpec((D, tile_f), lambda i, f: (0, f)),   # W1 slice
        pl.BlockSpec((1, tile_f), lambda i, f: (0, f)),   # b1 slice
        pl.BlockSpec((tile_f, D), lambda i, f: (f, 0)),   # W2 slice
        pl.BlockSpec((1, D), lambda i, f: (0, 0)),        # b2
    ]

    if has_mask:
        # Per-row validity flag computed in the wrapper: 1 lane of DMA instead of
        # a padded (N, M) slab + in-kernel cross-lane reduce.
        valid = (jnp.sum(mask.astype(jnp.float32), axis=-1) > 0.0)
        valid = valid.astype(jnp.float32).reshape(N, 1)
        if n_pad != N:
            valid = jnp.pad(valid, ((0, n_pad - N), (0, 0)))
        inputs.append(valid)
        in_specs.append(pl.BlockSpec((tile_n, 1), lambda i, f: (i, 0)))

    kernel = functools.partial(_ffn_kernel, has_mask=has_mask,
                               use_scratch=use_scratch,
                               single_f_step=single_f_step)

    scratch_shapes = [pltpu.VMEM((tile_n, D), jnp.float32)] if use_scratch else []

    # Truthful HBM-traffic estimate: weights restream once per row tile when
    # d_ff is streamed.
    n_row_tiles = n_pad // tile_n
    weight_bytes = int(w1.size + b1.size + w2.size + b2.size) * w_bytes
    restream = n_row_tiles if tile_f < d_ff else 1
    bytes_accessed = n_pad * D * (x_bytes + out_bytes) + restream * weight_bytes
    if has_mask:
        bytes_accessed += n_pad * 4
    cost = pl.CostEstimate(
        flops=int(4 * n_pad * D * d_ff),          # two matmuls
        transcendentals=int(n_pad * d_ff),        # erf in GELU
        bytes_accessed=int(bytes_accessed),
    )

    out = pl.pallas_call(
        kernel,
        out_shape=jax.ShapeDtypeStruct((n_pad, D), out_dtype),
        grid_spec=pltpu.PrefetchScalarGridSpec(
            num_scalar_prefetch=0,
            grid=(n_row_tiles, n_f),
            in_specs=in_specs,
            out_specs=pl.BlockSpec((tile_n, D), lambda i, f: (i, 0)),
            scratch_shapes=scratch_shapes,
        ),
        compiler_params=pltpu.CompilerParams(
            dimension_semantics=("parallel", "arbitrary"),
            vmem_limit_bytes=int(vmem_limit),
        ),
        cost_estimate=cost,
    )(*inputs)

    if n_pad != N:
        out = out[:N]
    return out.reshape(B, S, D)


def _reference(x, w1, b1, w2, b2, mask=None):
    h = jnp.dot(x, w1) + b1
    h = jax.nn.gelu(h, approximate=False)
    y = jnp.dot(h, w2) + b2
    if mask is not None:
        valid = (mask.sum(axis=-1) > 0)[..., None]
        y = jnp.where(valid, y, 0.0)
    return y


if __name__ == "__main__":
    B, S, d_model, d_ff, M = 2, 8, 32, 64, 5

    key = jax.random.PRNGKey(0)
    kx, kw1, kb1, kw2, kb2, km = jax.random.split(key, 6)

    x = jax.random.normal(kx, (B, S, d_model), dtype=jnp.float32)
    # nn.Linear-style deterministic init (uniform in +-1/sqrt(fan_in)),
    # stored transposed as (in, out) for row-major matmul.
    w1 = jax.random.uniform(kw1, (d_model, d_ff), jnp.float32,
                            -1.0 / jnp.sqrt(d_model), 1.0 / jnp.sqrt(d_model))
    b1 = jax.random.uniform(kb1, (d_ff,), jnp.float32,
                            -1.0 / jnp.sqrt(d_model), 1.0 / jnp.sqrt(d_model))
    w2 = jax.random.uniform(kw2, (d_ff, d_model), jnp.float32,
                            -1.0 / jnp.sqrt(d_ff), 1.0 / jnp.sqrt(d_ff))
    b2 = jax.random.uniform(kb2, (d_model,), jnp.float32,
                            -1.0 / jnp.sqrt(d_ff), 1.0 / jnp.sqrt(d_ff))

    # mask: some rows all-zero -> output rows zeroed
    mask = (jax.random.uniform(km, (B, S, M)) > 0.5).astype(jnp.float32)
    mask = mask.at[0, 0].set(0.0)  # force at least one fully-masked row

    # masked path
    out = positionwise_feed_forward(x, w1, b1, w2, b2, mask)
    out = jax.block_until_ready(out)
    ref = _reference(x, w1, b1, w2, b2, mask)
    assert out.shape == (B, S, d_model)
    assert jnp.allclose(out, ref, atol=1e-5, rtol=1e-5), "mismatch vs reference (mask)"

    # mask=None path (separate static kernel variant, no mask input at all)
    out_nm = positionwise_feed_forward(x, w1, b1, w2, b2, None)
    out_nm = jax.block_until_ready(out_nm)
    ref_nm = _reference(x, w1, b1, w2, b2, None)
    assert jnp.allclose(out_nm, ref_nm, atol=1e-5, rtol=1e-5), "mismatch vs reference (no mask)"

    print("KERNEL_OK")
</pallas_src>

<mosaic_0001>
module attributes {stable_mosaic.version = 11 : i64} {
  func.func @_ffn_kernel(%arg0: i32, %arg1: i32, %arg2: memref<8x32xf32, #tpu.memory_space<vmem>>, %arg3: memref<32x64xf32, #tpu.memory_space<vmem>>, %arg4: memref<1x64xf32, #tpu.memory_space<vmem>>, %arg5: memref<64x32xf32, #tpu.memory_space<vmem>>, %arg6: memref<1x32xf32, #tpu.memory_space<vmem>>, %arg7: memref<8x1xf32, #tpu.memory_space<vmem>>, %arg8: memref<8x32xf32, #tpu.memory_space<vmem>>) attributes {dimension_semantics = [#tpu.dimension_semantics<parallel>, #tpu.dimension_semantics<arbitrary>], iteration_bounds = array<i64: 2, 1>, scalar_prefetch = 0 : i64, scratch_operands = 0 : i64, tpu.core_type = #tpu.core_type<tc>, window_params = [{transform_indices = @transform_0, window_bounds = array<i64: 8, 32>}, {transform_indices = @transform_1, window_bounds = array<i64: 32, 64>}, {transform_indices = @transform_2, window_bounds = array<i64: 1, 64>}, {transform_indices = @transform_3, window_bounds = array<i64: 64, 32>}, {pipeline_mode = #tpu.pipeline_mode<synchronous>, transform_indices = @transform_4, window_bounds = array<i64: 1, 32>}, {transform_indices = @transform_5, window_bounds = array<i64: 8, 1>}, {transform_indices = @transform_6, window_bounds = array<i64: 8, 32>}]} {
    %c0 = arith.constant 0 : index
    %c0_0 = arith.constant 0 : index
    %0 = vector.load %arg2[%c0, %c0_0] : memref<8x32xf32, #tpu.memory_space<vmem>>, vector<8x32xf32>
    %c0_1 = arith.constant 0 : index
    %c0_2 = arith.constant 0 : index
    %1 = vector.load %arg3[%c0_1, %c0_2] : memref<32x64xf32, #tpu.memory_space<vmem>>, vector<32x64xf32>
    %cst = arith.constant dense<0.000000e+00> : vector<8x64xf32>
    %2 = tpu.matmul %0, %1, %cst {dimension_numbers = #tpu.dot_dimension_numbers<[1], [0], [0], [1], [0, 0, 1, 1], [], []>} : vector<8x32xf32>, vector<32x64xf32>, vector<8x64xf32> -> vector<8x64xf32>
    %c0_3 = arith.constant 0 : index
    %c0_4 = arith.constant 0 : index
    %3 = vector.load %arg4[%c0_3, %c0_4] : memref<1x64xf32, #tpu.memory_space<vmem>>, vector<1x64xf32>
    %4 = vector.broadcast %3 : vector<1x64xf32> to vector<8x64xf32>
    %5 = arith.addf %2, %4 : vector<8x64xf32>
    %cst_5 = arith.constant 5.000000e-01 : f32
    %6 = vector.broadcast %cst_5 : f32 to vector<8x64xf32>
    %7 = arith.mulf %6, %5 : vector<8x64xf32>
    %cst_6 = arith.constant 0.707106769 : f32
    %8 = vector.broadcast %cst_6 : f32 to vector<8x64xf32>
    %9 = arith.mulf %5, %8 : vector<8x64xf32>
    %10 = math.erf %9 : vector<8x64xf32>
    %cst_7 = arith.constant 1.000000e+00 : f32
    %11 = vector.broadcast %cst_7 : f32 to vector<8x64xf32>
    %12 = arith.addf %11, %10 : vector<8x64xf32>
    %13 = arith.mulf %7, %12 : vector<8x64xf32>
    %c0_8 = arith.constant 0 : index
    %c0_9 = arith.constant 0 : index
    %14 = vector.load %arg5[%c0_8, %c0_9] : memref<64x32xf32, #tpu.memory_space<vmem>>, vector<64x32xf32>
    %cst_10 = arith.constant dense<0.000000e+00> : vector<8x32xf32>
    %15 = tpu.matmul %13, %14, %cst_10 {dimension_numbers = #tpu.dot_dimension_numbers<[1], [0], [0], [1], [0, 0, 1, 1], [], []>} : vector<8x64xf32>, vector<64x32xf32>, vector<8x32xf32> -> vector<8x32xf32>
    %c0_11 = arith.constant 0 : index
    %c0_12 = arith.constant 0 : index
    %16 = vector.load %arg6[%c0_11, %c0_12] : memref<1x32xf32, #tpu.memory_space<vmem>>, vector<1x32xf32>
    %17 = vector.broadcast %16 : vector<1x32xf32> to vector<8x32xf32>
    %18 = arith.addf %15, %17 : vector<8x32xf32>
    %c0_13 = arith.constant 0 : index
    %c0_14 = arith.constant 0 : index
    %19 = vector.load %arg7[%c0_13, %c0_14] : memref<8x1xf32, #tpu.memory_space<vmem>>, vector<8x1xf32>
    %cst_15 = arith.constant 0.000000e+00 : f32
    %20 = vector.broadcast %cst_15 : f32 to vector<8x1xf32>
    %21 = arith.cmpf ogt, %19, %20 : vector<8x1xf32>
    %cst_16 = arith.constant 0.000000e+00 : f32
    %22 = vector.shape_cast %21 : vector<8x1xi1> to vector<8x1xi1>
    %23 = vector.broadcast %22 : vector<8x1xi1> to vector<8x32xi1>
    %24 = vector.broadcast %cst_16 : f32 to vector<8x32xf32>
    %25 = arith.select %23, %18, %24 : vector<8x32xi1>, vector<8x32xf32>
    %c0_17 = arith.constant 0 : index
    %c0_18 = arith.constant 0 : index
    %26 = vector.load %arg8[%c0_17, %c0_18] : memref<8x32xf32, #tpu.memory_space<vmem>>, vector<8x32xf32>
    tpu.vector_store %arg8[%c0_17, %c0_18], %25 {strides = array<i32>} : memref<8x32xf32, #tpu.memory_space<vmem>>, vector<8x32xf32>,
    return
  }
  func.func @transform_0(%arg0: i32, %arg1: i32) -> (i32, i32) {
    %c0_i32 = arith.constant 0 : i32
    %c0_i32_0 = arith.constant 0 : i32
    return %arg0, %c0_i32 : i32, i32
  }
  func.func @transform_1(%arg0: i32, %arg1: i32) -> (i32, i32) {
    %c0_i32 = arith.constant 0 : i32
    %c0_i32_0 = arith.constant 0 : i32
    return %c0_i32, %arg1 : i32, i32
  }
  func.func @transform_2(%arg0: i32, %arg1: i32) -> (i32, i32) {
    %c0_i32 = arith.constant 0 : i32
    %c0_i32_0 = arith.constant 0 : i32
    return %c0_i32, %arg1 : i32, i32
  }
  func.func @transform_3(%arg0: i32, %arg1: i32) -> (i32, i32) {
    %c0_i32 = arith.constant 0 : i32
    %c0_i32_0 = arith.constant 0 : i32
    return %arg1, %c0_i32 : i32, i32
  }
  func.func @transform_4(%arg0: i32, %arg1: i32) -> (i32, i32) {
    %c0_i32 = arith.constant 0 : i32
    %c0_i32_0 = arith.constant 0 : i32
    %c0_i32_1 = arith.constant 0 : i32
    return %c0_i32, %c0_i32_0 : i32, i32
  }
  func.func @transform_5(%arg0: i32, %arg1: i32) -> (i32, i32) {
    %c0_i32 = arith.constant 0 : i32
    %c0_i32_0 = arith.constant 0 : i32
    return %arg0, %c0_i32 : i32, i32
  }
  func.func @transform_6(%arg0: i32, %arg1: i32) -> (i32, i32) {
    %c0_i32 = arith.constant 0 : i32
    %c0_i32_0 = arith.constant 0 : i32
    return %arg0, %c0_i32 : i32, i32
  }
}

</mosaic_0001>

<llo_original>
// kernel: tpu_custom_call.1
$region0: #{tpu_custom_call.1}
  #allocation0 [shape = 'u32[]', space=smem, size = 0x4, offset = 0x4, fixed_abs, tag = 'smem constant byte address 0x4 - core index']
  #allocation1 [shape = 'u32[144,128]{1,0:T(1,128)}', space=vmem, size = 0x12000, scoped, tag = 'internal scratch']
  %s0 = inlined_call_operand.vmem [shape: f32[16,32], index: 0, kind: input, shape index: {}]
  %s1 = inlined_call_operand.vmem [shape: f32[32,64], index: 1, kind: input, shape index: {}]
  %s2 = inlined_call_operand.vmem [shape: f32[1,64], index: 2, kind: input, shape index: {}]
  %s3 = inlined_call_operand.vmem [shape: f32[64,32], index: 3, kind: input, shape index: {}]
  %s4 = inlined_call_operand.vmem [shape: f32[1,32], index: 4, kind: input, shape index: {}]
  %s5 = inlined_call_operand.vmem [shape: f32[16,1], index: 5, kind: input, shape index: {}]
  %s6 = inlined_call_operand.hbm [shape: f32[16,32], index: 6, kind: output, shape index: {}]
  %s7 = sld [smem:[#allocation0]]
  $region57: #{tpu_custom_call.1} parent=0
    _
  %s9 = ssub.s32 1, %s7
  %s10 = scalar_select 0, %s9, %s7
  $region1: #{tpu_custom_call.1} parent=0
    #allocation2 [shape = 'u8[8192]{0}', space=vmem, size = 0x2000, scoped, tag = 'output window, operand 0']
    #allocation3 [shape = 's32[2]{0}', space=sflag, size = 0x8, scoped, tag = 'scoped memory for tpu_custom_call.1']
    %11 = vsyncpa [#allocation3], 0
    %s12 = scalar_lea.sflag [#allocation3], 1
    %13 = vsyncpa %s12, 0
    loop: start=0, step=1, limit=4
    $region2: #{tpu_custom_call.1} parent=1 // loop_pre_header
      _
    $region3: #{tpu_custom_call.1} parent=1 // loop_header
      %s15 = sphi 0, %s19
      %p16 = scmp.ge.s32.totalorder %s15, 4
      %s22 = sphi 0, %s34
      %s23 = sphi 0, %s30
      %s24 = sphi 0, %s22
      %s25 = sphi 0, %s23
      %s26 = sphi 0, %s24
      %s27 = sphi 0, %s25
      %s37 = sphi 0, %s39
      %s40 = sphi 0, %s37
      %s41 = sphi 0, %s40
      %s57 = sphi 0, %s41
      %s63 = sphi 0, %s65
      %s66 = sphi 0, %s63
      %s67 = sphi 0, %s66
      %s83 = sphi 0, %s67
      %s89 = sphi 0, %s91
      %s92 = sphi 0, %s89
      %s93 = sphi 0, %s92
      %s109 = sphi 0, %s93
      %s115 = sphi 0, %s117
      %s118 = sphi 0, %s115
      %s119 = sphi 0, %s118
      %s135 = sphi 0, %s119
      %s139 = sphi 0, %s139
      %s141 = sphi 0, %s139
      %s142 = sphi 0, %s141
      %s156 = sphi 0, %s142
      %s162 = sphi 0, %s164
      %s165 = sphi 0, %s162
      %s166 = sphi 0, %s165
      %s182 = sphi 0, %s166
      %s188 = sphi 0, %s190
      %s191 = sphi 0, %s188
      %s192 = sphi 0, %s191
      %s208 = sphi 0, %s192
    $region4: #{tpu_custom_call.1} parent=1 // loop_header_branch
      %18 = sbr.rel (%p16) target = $region8
    $region5: #{tpu_custom_call.1} parent=1 // loop_body
      %s20 = ssub.s32 %s15, 1
      %s21 = ssub.s32 %s15, 2
      %s28 = sadd.s32 1, %s23
      %p29 = scmp.ge.s32.totalorder %s28, 1
      %s30 = scalar_select %p29, 0, %s28
      %s31 = sadd.s32 1, %s22
      %s32 = scalar_select %p29, %s31, %s22
      %p33 = scmp.ge.s32.totalorder %s32, 2
      %s34 = scalar_select %p33, 0, %s32
      %s35 = ssub.s32 %s22, %s34
      %p36 = scmp.eq.s32.totalorder %s35, 0
      %s38 = sadd.s32 %s37, 1
      %s39 = scalar_select %p36, %s37, %s38
      %p42 = pneg %p36
      %p43 = scmp.eq.s32.totalorder %s15, 1
      %p44 = por %p42, %p43
      %p45 = scmp.ne.s32.totalorder %s37, %s40
      %p46 = scmp.eq.s32.totalorder %s15, 0
      %p47 = por %p45, %p46
      %p48 = scmp.ne.s32.totalorder %s37, %s40
      %p49 = scmp.eq.s32.totalorder %s20, 1
      %p50 = por %p48, %p49
      %p51 = scmp.ne.s32.totalorder %s40, %s41
      %p52 = scmp.eq.s32.totalorder %s20, 0
      %p53 = por %p51, %p52
      %p54 = scmp.ne.s32.totalorder %s40, %s41
      %p55 = scmp.eq.s32.totalorder %s21, 1
      %p56 = por %p54, %p55
      %p58 = scmp.ne.s32.totalorder %s41, %s57
      %p59 = scmp.eq.s32.totalorder %s21, 0
      %p60 = por %p58, %p59
      %s61 = ssub.s32 %s23, %s30
      %p62 = scmp.eq.s32.totalorder %s61, 0
      %s64 = sadd.s32 %s63, 1
      %s65 = scalar_select %p62, %s63, %s64
      %p68 = pneg %p62
      %p69 = scmp.eq.s32.totalorder %s15, 1
      %p70 = por %p68, %p69
      %p71 = scmp.ne.s32.totalorder %s63, %s66
      %p72 = scmp.eq.s32.totalorder %s15, 0
      %p73 = por %p71, %p72
      %p74 = scmp.ne.s32.totalorder %s63, %s66
      %p75 = scmp.eq.s32.totalorder %s20, 1
      %p76 = por %p74, %p75
      %p77 = scmp.ne.s32.totalorder %s66, %s67
      %p78 = scmp.eq.s32.totalorder %s20, 0
      %p79 = por %p77, %p78
      %p80 = scmp.ne.s32.totalorder %s66, %s67
      %p81 = scmp.eq.s32.totalorder %s21, 1
      %p82 = por %p80, %p81
      %p84 = scmp.ne.s32.totalorder %s67, %s83
      %p85 = scmp.eq.s32.totalorder %s21, 0
      %p86 = por %p84, %p85
      %s87 = ssub.s32 %s23, %s30
      %p88 = scmp.eq.s32.totalorder %s87, 0
      %s90 = sadd.s32 %s89, 1
      %s91 = scalar_select %p88, %s89, %s90
      %p94 = pneg %p88
      %p95 = scmp.eq.s32.totalorder %s15, 1
      %p96 = por %p94, %p95
      %p97 = scmp.ne.s32.totalorder %s89, %s92
      %p98 = scmp.eq.s32.totalorder %s15, 0
      %p99 = por %p97, %p98
      %p100 = scmp.ne.s32.totalorder %s89, %s92
      %p101 = scmp.eq.s32.totalorder %s20, 1
      %p102 = por %p100, %p101
      %p103 = scmp.ne.s32.totalorder %s92, %s93
      %p104 = scmp.eq.s32.totalorder %s20, 0
      %p105 = por %p103, %p104
      %p106 = scmp.ne.s32.totalorder %s92, %s93
      %p107 = scmp.eq.s32.totalorder %s21, 1
      %p108 = por %p106, %p107
      %p110 = scmp.ne.s32.totalorder %s93, %s109
      %p111 = scmp.eq.s32.totalorder %s21, 0
      %p112 = por %p110, %p111
      %s113 = ssub.s32 %s23, %s30
      %p114 = scmp.eq.s32.totalorder %s113, 0
      %s116 = sadd.s32 %s115, 1
      %s117 = scalar_select %p114, %s115, %s116
      %p120 = pneg %p114
      %p121 = scmp.eq.s32.totalorder %s15, 1
      %p122 = por %p120, %p121
      %p123 = scmp.ne.s32.totalorder %s115, %s118
      %p124 = scmp.eq.s32.totalorder %s15, 0
      %p125 = por %p123, %p124
      %p126 = scmp.ne.s32.totalorder %s115, %s118
      %p127 = scmp.eq.s32.totalorder %s20, 1
      %p128 = por %p126, %p127
      %p129 = scmp.ne.s32.totalorder %s118, %s119
      %p130 = scmp.eq.s32.totalorder %s20, 0
      %p131 = por %p129, %p130
      %p132 = scmp.ne.s32.totalorder %s118, %s119
      %p133 = scmp.eq.s32.totalorder %s21, 1
      %p134 = por %p132, %p133
      %p136 = scmp.ne.s32.totalorder %s119, %s135
      %p137 = scmp.eq.s32.totalorder %s21, 0
      %p138 = por %p136, %p137
      %s140 = sadd.s32 %s139, 1
      %p143 = scmp.eq.s32.totalorder %s15, 1
      %p144 = scmp.ne.s32.totalorder %s139, %s141
      %p145 = scmp.eq.s32.totalorder %s15, 0
      %p146 = por %p144, %p145
      %p147 = scmp.ne.s32.totalorder %s139, %s141
      %p148 = scmp.eq.s32.totalorder %s20, 1
      %p149 = por %p147, %p148
      %p150 = scmp.ne.s32.totalorder %s141, %s142
      %p151 = scmp.eq.s32.totalorder %s20, 0
      %p152 = por %p150, %p151
      %p153 = scmp.ne.s32.totalorder %s141, %s142
      %p154 = scmp.eq.s32.totalorder %s21, 1
      %p155 = por %p153, %p154
      %p157 = scmp.ne.s32.totalorder %s142, %s156
      %p158 = scmp.eq.s32.totalorder %s21, 0
      %p159 = por %p157, %p158
      %s160 = ssub.s32 %s22, %s34
      %p161 = scmp.eq.s32.totalorder %s160, 0
      %s163 = sadd.s32 %s162, 1
      %s164 = scalar_select %p161, %s162, %s163
      %p167 = pneg %p161
      %p168 = scmp.eq.s32.totalorder %s15, 1
      %p169 = por %p167, %p168
      %p170 = scmp.ne.s32.totalorder %s162, %s165
      %p171 = scmp.eq.s32.totalorder %s15, 0
      %p172 = por %p170, %p171
      %p173 = scmp.ne.s32.totalorder %s162, %s165
      %p174 = scmp.eq.s32.totalorder %s20, 1
      %p175 = por %p173, %p174
      %p176 = scmp.ne.s32.totalorder %s165, %s166
      %p177 = scmp.eq.s32.totalorder %s20, 0
      %p178 = por %p176, %p177
      %p179 = scmp.ne.s32.totalorder %s165, %s166
      %p180 = scmp.eq.s32.totalorder %s21, 1
      %p181 = por %p179, %p180
      %p183 = scmp.ne.s32.totalorder %s166, %s182
      %p184 = scmp.eq.s32.totalorder %s21, 0
      %p185 = por %p183, %p184
      %s186 = ssub.s32 %s22, %s34
      %p187 = scmp.eq.s32.totalorder %s186, 0
      %s189 = sadd.s32 %s188, 1
      %s190 = scalar_select %p187, %s188, %s189
      %p193 = pneg %p187
      %p194 = scmp.eq.s32.totalorder %s15, 1
      %p195 = por %p193, %p194
      %p196 = scmp.ne.s32.totalorder %s188, %s191
      %p197 = scmp.eq.s32.totalorder %s15, 0
      %p198 = por %p196, %p197
      %p199 = scmp.ne.s32.totalorder %s188, %s191
      %p200 = scmp.eq.s32.totalorder %s20, 1
      %p201 = por %p199, %p200
      %p202 = scmp.ne.s32.totalorder %s191, %s192
      %p203 = scmp.eq.s32.totalorder %s20, 0
      %p204 = por %p202, %p203
      %p205 = scmp.ne.s32.totalorder %s191, %s192
      %p206 = scmp.eq.s32.totalorder %s21, 1
      %p207 = por %p205, %p206
      %p209 = scmp.ne.s32.totalorder %s192, %s208
      %p210 = scmp.eq.s32.totalorder %s21, 0
      %p211 = por %p209, %p210
      %p212 = scmp.le.s32.totalorder 1, %s15
      %p213 = scmp.lt.s32.totalorder %s15, 3
      %p214 = pnand %p212, %p213
      %p215 = pneg %p214
      // Predicated region
      $region9: #{tpu_custom_call.1} parent=5 // pred_check
        _
      $region10: #{tpu_custom_call.1} parent=5 // pred_check_branch
        %217 = sbr.rel (%p214) target = $region12
      $region11: #{tpu_custom_call.1} parent=5 // pred_region
        %s218 = ssub.s32 %s15, 1
        // Predicated region
        $region13: #{tpu_custom_call.1} parent=11 // pred_check
          %p219 = pneg %p79
        $region14: #{tpu_custom_call.1} parent=11 // pred_check_branch
          %221 = sbr.rel (%p219) target = $region16
        $region15: #{tpu_custom_call.1} parent=11 // pred_region
          %p222 = scmp.lt.s32.totalorder %s25, 0
          %s223 = scalar_select %p222, %s25, 0
          %s224 = smul.addr %s223, 8
          %s225 = scalar_lea.vmem %s1, %s224
        $region16: #{tpu_custom_call.1} parent=11 // pred_fallthru
          _
        // Predicated region
        $region17: #{tpu_custom_call.1} parent=11 // pred_check
          %p226 = pneg %p105
        $region18: #{tpu_custom_call.1} parent=11 // pred_check_branch
          %228 = sbr.rel (%p226) target = $region20
        $region19: #{tpu_custom_call.1} parent=11 // pred_region
          %p229 = scmp.lt.s32.totalorder %s25, 0
          %s230 = scalar_select %p229, %s25, 0
          %s231 = scalar_lea.vmem %s2, %s230
        $region20: #{tpu_custom_call.1} parent=11 // pred_fallthru
          _
        // Predicated region
        $region21: #{tpu_custom_call.1} parent=11 // pred_check
          %p232 = pneg %p131
        $region22: #{tpu_custom_call.1} parent=11 // pred_check_branch
          %234 = sbr.rel (%p232) target = $region24
        $region23: #{tpu_custom_call.1} parent=11 // pred_region
          %s235 = smul.u32 8, %s25
          %p236 = scmp.lt.s32.totalorder %s235, 7
          %s237 = scalar_select %p236, %s235, 7
          %s238 = smul.addr %s237, 8
          %s239 = scalar_lea.vmem %s3, %s238
          %s240 = smul.u32 8, %s25
        $region24: #{tpu_custom_call.1} parent=11 // pred_fallthru
          _
        // Predicated region
        $region25: #{tpu_custom_call.1} parent=11 // pred_check
          %p241 = pneg %p152
        $region26: #{tpu_custom_call.1} parent=11 // pred_check_branch
          %243 = sbr.rel (%p241) target = $region28
        $region27: #{tpu_custom_call.1} parent=11 // pred_region
          _
        $region28: #{tpu_custom_call.1} parent=11 // pred_fallthru
          _
      $region12: #{tpu_custom_call.1} parent=5 // pred_fallthru
        _
      %p244 = scmp.lt.s32.totalorder %s15, 2
      // Predicated region
      $region29: #{tpu_custom_call.1} parent=5 // pred_check
        %p245 = pneg %p244
      $region30: #{tpu_custom_call.1} parent=5 // pred_check_branch
        %247 = sbr.rel (%p245) target = $region32
      $region31: #{tpu_custom_call.1} parent=5 // pred_region
        // Predicated region
        $region33: #{tpu_custom_call.1} parent=31 // pred_check
          %p248 = pneg %p47
        $region34: #{tpu_custom_call.1} parent=31 // pred_check_branch
          %250 = sbr.rel (%p248) target = $region36
        $region35: #{tpu_custom_call.1} parent=31 // pred_region
          %p251 = scmp.lt.s32.totalorder %s22, 1
          %s252 = scalar_select %p251, %s22, 1
          %s253 = smul.addr %s252, 8
          %s254 = scalar_lea.vmem %s0, %s253
        $region36: #{tpu_custom_call.1} parent=31 // pred_fallthru
          _
        // Predicated region
        $region37: #{tpu_custom_call.1} parent=31 // pred_check
          %p255 = pneg %p172
        $region38: #{tpu_custom_call.1} parent=31 // pred_check_branch
          %257 = sbr.rel (%p255) target = $region40
        $region39: #{tpu_custom_call.1} parent=31 // pred_region
          %p258 = scmp.lt.s32.totalorder %s22, 1
          %s259 = scalar_select %p258, %s22, 1
          %s260 = smul.addr %s259, 8
          %s261 = scalar_lea.vmem %s5, %s260
        $region40: #{tpu_custom_call.1} parent=31 // pred_fallthru
          _
      $region32: #{tpu_custom_call.1} parent=5 // pred_fallthru
        _
      %p262 = scmp.le.s32.totalorder 1, %s15
      %p263 = scmp.lt.s32.totalorder %s15, 3
      %p264 = pnand %p262, %p263
      %p265 = pneg %p264
      // Predicated region
      $region41: #{tpu_custom_call.1} parent=5 // pred_check
        _
      $region42: #{tpu_custom_call.1} parent=5 // pred_check_branch
        %267 = sbr.rel (%p264) target = $region44
      $region43: #{tpu_custom_call.1} parent=5 // pred_region
        %s268 = ssub.s32 %s15, 1
        %p269 = scmp.lt.s32.totalorder %s24, 1
        %s270 = scalar_select %p269, %s24, 1
        %s271 = smul.addr %s270, 8
        %s272 = scalar_lea.vmem %s0, %s271
        %p273 = pneg %p53
        %p274 = pneg %p50
        %p275 = scmp.lt.s32.totalorder %s25, 0
        %s276 = scalar_select %p275, %s25, 0
        %s277 = smul.addr %s276, 8
        %s278 = scalar_lea.vmem %s1, %s277
        %p279 = pneg %p79
        %p280 = pneg %p76
        %p281 = scmp.lt.s32.totalorder %s25, 0
        %s282 = scalar_select %p281, %s25, 0
        %s283 = scalar_lea.vmem %s2, %s282
        %p284 = pneg %p105
        %p285 = pneg %p102
        %s286 = smul.u32 8, %s25
        %p287 = scmp.lt.s32.totalorder %s286, 7
        %s288 = scalar_select %p287, %s286, 7
        %s289 = smul.addr %s288, 8
        %s290 = scalar_lea.vmem %s3, %s289
        %p291 = pneg %p131
        %p292 = pneg %p128
        %p293 = pneg %p152
        %p294 = pneg %p149
        %p295 = scmp.lt.s32.totalorder %s24, 1
        %s296 = scalar_select %p295, %s24, 1
        %s297 = smul.addr %s296, 8
        %s298 = scalar_lea.vmem %s5, %s297
        %p299 = pneg %p178
        %p300 = pneg %p175
        %p301 = pneg %p204
        %p302 = pneg %p201
        %s303 = sand.u32 %s191, 1
        %s304 = scalar_lea.sflag [#allocation3], %s303
        %s305 = sand.u32 %s191, 1
        %s306 = smul.addr %s305, 8
        %s307 = scalar_lea.vmem [#allocation2], %s306
        %p308 = scmp.lt.s32.totalorder %s24, 1
        %s309 = scalar_select %p308, %s24, 1
        %s310 = smul.addr %s309, 8
        %s311 = scalar_lea.vmem %s0, %s310
        %p312 = scmp.lt.s32.totalorder %s25, 0
        %s313 = scalar_select %p312, %s25, 0
        %s314 = smul.addr %s313, 8
        %s315 = scalar_lea.vmem %s1, %s314
        %p316 = scmp.lt.s32.totalorder %s25, 0
        %s317 = scalar_select %p316, %s25, 0
        %s318 = scalar_lea.vmem %s2, %s317
        %s319 = smul.u32 8, %s25
        %p320 = scmp.lt.s32.totalorder %s319, 7
        %s321 = scalar_select %p320, %s319, 7
        %s322 = smul.addr %s321, 8
        %s323 = scalar_lea.vmem %s3, %s322
        %s324 = smul.u32 8, %s25
        %p325 = scmp.lt.s32.totalorder %s24, 1
        %s326 = scalar_select %p325, %s24, 1
        %s327 = smul.addr %s326, 8
        %s328 = scalar_lea.vmem %s5, %s327
        %v329 = vld [vmem:[%s311] sm:$0xff]
        %v330 = vld [vmem:[%s315] sm:$0xff]
        %v331 = vld [vmem:[%s315 + $0x8] sm:$0xff]
        %v332 = vld [vmem:[%s315 + $0x10] sm:$0xff]
        %v333 = vld [vmem:[%s315 + $0x18] sm:$0xff]
        %v334 = vld [vmem:[%s318] sm:$0x1]
        %v336 = vlaneseq
        %v337 = vshrl.u32 %v336, 7
        %v338 = vsub.s32 0, %v337
        %v339 = vrot.slane %v334, %v338
        %vm341 = vcmask 261120
        %v343 = vsel %vm341, %v329, 0
        %345 = vmatprep.subr.mxu0 0.0
        %346 = vmatpush1.msra.mxu0 %v330
        %347 = vmatprep.subr.mxu0 0.0
        %348 = vmatpush1.msra.mxu0 %v331
        %349 = vmatprep.subr.mxu0 0.0
        %350 = vmatpush1.msra.mxu0 %v332
        %351 = vmatprep.subr.mxu0 0.0
        %352 = vmatpush1.msra.mxu0 %v333
        %353 = vmatprep.subr.mxu0 0.0
        %354 = vmatpush1.msra.mxu0 0.0
        %355 = vmatprep.subr.mxu0 0.0
        %356 = vmatpush1.msra.mxu0 0.0
        %357 = vmatprep.subr.mxu0 0.0
        %358 = vmatpush1.msra.mxu0 0.0
        %359 = vmatprep.subr.mxu0 0.0
        %360 = vmatpush1.msra.mxu0 0.0
        %361 = vmatprep.subr.mxu0 0.0
        %362 = vmatpush1.msra.mxu0 0.0
        %363 = vmatprep.subr.mxu0 0.0
        %364 = vmatpush1.msra.mxu0 0.0
        %365 = vmatprep.subr.mxu0 0.0
        %366 = vmatpush1.msra.mxu0 0.0
        %367 = vmatprep.subr.mxu0 0.0
        %368 = vmatpush1.msra.mxu0 0.0
        %369 = vmatprep.subr.mxu0 0.0
        %370 = vmatpush1.msra.mxu0 0.0
        %371 = vmatprep.subr.mxu0 0.0
        %372 = vmatpush1.msra.mxu0 0.0
        %373 = vmatprep.subr.mxu0 0.0
        %374 = vmatpush1.msra.mxu0 0.0
        %375 = vmatprep.subr.mxu0 0.0
        %376 = vmatpush1.msra.mxu0 0.0
        %377 = vmatprep.subr.mxu0 0.0
        %378 = vmatpush1.msra.mxu0 0.0
        %379 = vmatprep.subr.mxu0 0.0
        %380 = vmatpush1.msra.mxu0 0.0
        %381 = vmatprep.subr.mxu0 0.0
        %382 = vmatpush1.msra.mxu0 0.0
        %383 = vmatprep.subr.mxu0 0.0
        %384 = vmatpush1.msra.mxu0 0.0
        %385 = vmatprep.subr.mxu0 0.0
        %386 = vmatpush1.msra.mxu0 0.0
        %387 = vmatprep.subr.mxu0 0.0
        %388 = vmatpush1.msra.mxu0 0.0
        %389 = vmatprep.subr.mxu0 0.0
        %390 = vmatpush1.msra.mxu0 0.0
        %391 = vmatprep.subr.mxu0 0.0
        %392 = vmatpush1.msra.mxu0 0.0
        %393 = vmatprep.subr.mxu0 0.0
        %394 = vmatpush1.msra.mxu0 0.0
        %395 = vmatprep.subr.mxu0 0.0
        %396 = vmatpush1.msra.mxu0 0.0
        %397 = vmatprep.subr.mxu0 0.0
        %398 = vmatpush1.msra.mxu0 0.0
        %399 = vmatprep.subr.mxu0 0.0
        %400 = vmatpush1.msra.mxu0 0.0
        %401 = vmatprep.subr.mxu0 0.0
        %402 = vmatpush1.msra.mxu0 0.0
        %403 = vmatprep.subr.mxu0 0.0
        %404 = vmatpush1.msra.mxu0 0.0
        %405 = vmatprep.subr.mxu0 0.0
        %406 = vmatpush1.msra.mxu0 0.0
        %407 = vmatprep.subr.mxu0 0.0
        %408 = vmatpush1.msra.mxu0 0.0
        %409 = vmatprep.mubr.f32.mxu0 0.0
        %410 = vmatmul.mubr.f32.gmra.mrb[0].mxu0 %v343
        %v411 = vpop.f32.mrb[0].mxu0
        %v412 = vadd.f32 %v339, %v411
        %v413 = vpop.f32.mrb[0].mxu0
        %414 = vdwg.mxu0
        %v415 = vmul.f32 %v412, 0.5
        %v416 = vmul.f32 %v412, 0.70710677
        %v417 = verf.f32.pop %v416
        %v418 = vadd.f32 %v417, 1.0
        %v419 = vmul.f32 %v415, %v418
        %v420 = vld [vmem:[%s323] sm:$0xff]
        %v421 = vld [vmem:[%s323 + $0x8] sm:$0xff]
        %v422 = vld [vmem:[%s323 + $0x10] sm:$0xff]
        %v423 = vld [vmem:[%s323 + $0x18] sm:$0xff]
        %v424 = vld [vmem:[%s323 + $0x20] sm:$0xff]
        %v425 = vld [vmem:[%s323 + $0x28] sm:$0xff]
        %v426 = vld [vmem:[%s323 + $0x30] sm:$0xff]
        %v427 = vld [vmem:[%s323 + $0x38] sm:$0xff]
        %v428 = vld [vmem:[%s4] sm:$0x1]
        %v430 = vlaneseq
        %v431 = vshrl.u32 %v430, 7
        %v432 = vsub.s32 0, %v431
        %v433 = vrot.slane %v428, %v432
        %vm435 = vcmask 523264
        %v437 = vsel %vm435, %v419, 0
        %439 = vmatprep.subr.mxu0 0.0
        %440 = vmatpush1.msra.mxu0 %v420
        %441 = vmatprep.subr.mxu0 0.0
        %442 = vmatpush1.msra.mxu0 %v421
        %443 = vmatprep.subr.mxu0 0.0
        %444 = vmatpush1.msra.mxu0 %v422
        %445 = vmatprep.subr.mxu0 0.0
        %446 = vmatpush1.msra.mxu0 %v423
        %447 = vmatprep.subr.mxu0 0.0
        %448 = vmatpush1.msra.mxu0 %v424
        %449 = vmatprep.subr.mxu0 0.0
        %450 = vmatpush1.msra.mxu0 %v425
        %451 = vmatprep.subr.mxu0 0.0
        %452 = vmatpush1.msra.mxu0 %v426
        %453 = vmatprep.subr.mxu0 0.0
        %454 = vmatpush1.msra.mxu0 %v427
        %455 = vmatprep.subr.mxu0 0.0
        %456 = vmatpush1.msra.mxu0 0.0
        %457 = vmatprep.subr.mxu0 0.0
        %458 = vmatpush1.msra.mxu0 0.0
        %459 = vmatprep.subr.mxu0 0.0
        %460 = vmatpush1.msra.mxu0 0.0
        %461 = vmatprep.subr.mxu0 0.0
        %462 = vmatpush1.msra.mxu0 0.0
        %463 = vmatprep.subr.mxu0 0.0
        %464 = vmatpush1.msra.mxu0 0.0
        %465 = vmatprep.subr.mxu0 0.0
        %466 = vmatpush1.msra.mxu0 0.0
        %467 = vmatprep.subr.mxu0 0.0
        %468 = vmatpush1.msra.mxu0 0.0
        %469 = vmatprep.subr.mxu0 0.0
        %470 = vmatpush1.msra.mxu0 0.0
        %471 = vmatprep.subr.mxu0 0.0
        %472 = vmatpush1.msra.mxu0 0.0
        %473 = vmatprep.subr.mxu0 0.0
        %474 = vmatpush1.msra.mxu0 0.0
        %475 = vmatprep.subr.mxu0 0.0
        %476 = vmatpush1.msra.mxu0 0.0
        %477 = vmatprep.subr.mxu0 0.0
        %478 = vmatpush1.msra.mxu0 0.0
        %479 = vmatprep.subr.mxu0 0.0
        %480 = vmatpush1.msra.mxu0 0.0
        %481 = vmatprep.subr.mxu0 0.0
        %482 = vmatpush1.msra.mxu0 0.0
        %483 = vmatprep.subr.mxu0 0.0
        %484 = vmatpush1.msra.mxu0 0.0
        %485 = vmatprep.subr.mxu0 0.0
        %486 = vmatpush1.msra.mxu0 0.0
        %487 = vmatprep.subr.mxu0 0.0
        %488 = vmatpush1.msra.mxu0 0.0
        %489 = vmatprep.subr.mxu0 0.0
        %490 = vmatpush1.msra.mxu0 0.0
        %491 = vmatprep.subr.mxu0 0.0
        %492 = vmatpush1.msra.mxu0 0.0
        %493 = vmatprep.subr.mxu0 0.0
        %494 = vmatpush1.msra.mxu0 0.0
        %495 = vmatprep.subr.mxu0 0.0
        %496 = vmatpush1.msra.mxu0 0.0
        %497 = vmatprep.subr.mxu0 0.0
        %498 = vmatpush1.msra.mxu0 0.0
        %499 = vmatprep.subr.mxu0 0.0
        %500 = vmatpush1.msra.mxu0 0.0
        %501 = vmatprep.subr.mxu0 0.0
        %502 = vmatpush1.msra.mxu0 0.0
        %503 = vmatprep.mubr.f32.mxu0 0.0
        %504 = vmatmul.mubr.f32.gmra.mrb[0].mxu0 %v437
        %v505 = vpop.f32.mrb[0].mxu0
        %v506 = vadd.f32 %v433, %v505
        %v507 = vpop.f32.mrb[0].mxu0
        %508 = vdwg.mxu0
        %v509 = vld [vmem:[%s328] sm:$0xff]
        %vm510 = vcmp.gt.f32.partialorder %v509, 0.0
        %v511 = vsel %vm510, 1, 0
        %512 = vset.pattern.permute.xlu0 0
        %513 = vperm.xlu0 %512, %v511
        %v514 = vpop.permute.xlu0 %513
        %vm515 = vcmp.eq.s32.totalorder %v514, 1
        %v516 = vsel %vm515, %v506, 0.0
        %517 = vst.msk [vmem:[%s307] sm:$0xff] %vm341, %v516
        %s518 = sand.u32 %s191, 1
        %s519 = scalar_lea.sflag [#allocation3], %s518
        %s520 = sand.u32 %s191, 1
        %s521 = smul.addr %s520, 8
        %s522 = scalar_lea.vmem [#allocation2], %s521
        // Predicated region
        $region45: #{tpu_custom_call.1} parent=43 // pred_check
          %p523 = pneg %p201
        $region46: #{tpu_custom_call.1} parent=43 // pred_check_branch
          %525 = sbr.rel (%p523) target = $region48
        $region47: #{tpu_custom_call.1} parent=43 // pred_region
          %s527 = ssub.s32 128, 128
          %528 = vsyncadd %s519, %s527
          %s529 = smul.addr %s24, 128
          %s530 = scalar_lea.hbm %s6, %s529
          %s532 = sshll.u32 %s522, 4
          %s533 = int_to_ptr.vmem [resolvable:$true] %s532
          %535 = dma.vmem_to_hbm [thread:$0]  %s533, 128, %s530, %s519
        $region48: #{tpu_custom_call.1} parent=43 // pred_fallthru
          _
      $region44: #{tpu_custom_call.1} parent=5 // pred_fallthru
        _
      %p536 = scmp.le.s32.totalorder 2, %s15
      // Predicated region
      $region49: #{tpu_custom_call.1} parent=5 // pred_check
        %p537 = pneg %p536
      $region50: #{tpu_custom_call.1} parent=5 // pred_check_branch
        %539 = sbr.rel (%p537) target = $region52
      $region51: #{tpu_custom_call.1} parent=5 // pred_region
        %s540 = ssub.s32 %s15, 2
        // Predicated region
        $region53: #{tpu_custom_call.1} parent=51 // pred_check
          %p541 = pneg %p207
        $region54: #{tpu_custom_call.1} parent=51 // pred_check_branch
          %543 = sbr.rel (%p541) target = $region56
        $region55: #{tpu_custom_call.1} parent=51 // pred_region
          %s544 = sand.u32 %s192, 1
          %s545 = scalar_lea.sflag [#allocation3], %s544
          %s546 = sand.u32 %s192, 1
          %s547 = smul.addr %s546, 8
          %s548 = scalar_lea.vmem [#allocation2], %s547
          %549 = dma.done %s545, 128
        $region56: #{tpu_custom_call.1} parent=51 // pred_fallthru
          _
      $region52: #{tpu_custom_call.1} parent=5 // pred_fallthru
        _
    $region6: #{tpu_custom_call.1} parent=1 // loop_footer
      %s19 = sadd.s32 1, %s15
    $region7: #{tpu_custom_call.1} parent=1 // loop_footer_branch
      %14 = sbr.rel target = $region3
    $region8: #{tpu_custom_call.1} parent=1 // loop_exit
      _
    %550 = vsyncpa [#allocation3], 1
    %s551 = scalar_lea.sflag [#allocation3], 1
    %552 = vsyncpa %s551, 1

</llo_original>
